<compile_context>
chip_gen: v5e
topology: v5e:2x2
jax: 0.10.0
libtpu: 0.0.40
codegen_flags: <defaults>
</compile_context>

<pallas_src>
import math

import jax
import jax.numpy as jnp
from jax.experimental import pallas as pl
from jax.experimental.pallas import tpu as pltpu


def _make_wmse_kernel(tm, fold_rows, tail_rows):
    """Kernel factory with static tiling params baked in.

    tm         -- rows per input block
    fold_rows  -- 8 when tm % 8 == 0 (sublane fold), else 1 (full row fold)
    tail_rows  -- valid rows in the globally-last block (== tm when the row
                  count divides evenly; < tm enables the in-kernel mask)
    """
    partial_last = tail_rows < tm

    def kernel(pred_ref, true_ref, w_ref, out_ref):
        # Grid: (num_par, steps). Axis 1 is the reduction axis; the output
        # block index only depends on axis 0, so out_ref stays resident in
        # VMEM across the whole reduction and acts as the accumulator.
        r = pl.program_id(1)

        @pl.when(r == 0)
        def _():
            out_ref[...] = jnp.zeros_like(out_ref)

        # Upcast in-register; inputs stream HBM->VMEM at their native dtype.
        diff = pred_ref[...].astype(jnp.float32) - true_ref[...].astype(jnp.float32)
        contrib = diff * diff * w_ref[...]          # (tm, R) f32, pure VPU

        if partial_last:
            # Mask garbage rows of the (statically known) partial last block;
            # jnp.where selects, so NaN/Inf garbage cannot leak into the sum.
            p = pl.program_id(0)
            is_last = jnp.logical_and(p == pl.num_programs(0) - 1,
                                      r == pl.num_programs(1) - 1)
            row_ids = jax.lax.broadcasted_iota(jnp.int32, contrib.shape, 0)
            keep = jnp.logical_or(jnp.logical_not(is_last), row_ids < tail_rows)
            contrib = jnp.where(keep, contrib, jnp.float32(0.0))

        if fold_rows == 8:
            tm_, R = contrib.shape
            # Sublane fold (tm, R) -> (8, R); stays lane-dense, no XLU lane ops.
            out_ref[...] += contrib.reshape(tm_ // 8, 8, R).sum(axis=0)
        else:
            out_ref[...] += jnp.sum(contrib, axis=0, keepdims=True)

    return kernel


def weighted_mse_loss(y_pred, y_true, weights, *, target_block_bytes=2 * 1024 * 1024):
    """Weighted MSE loss. y_pred/y_true: (..., W); weights: () or (W,)."""
    assert y_pred.shape == y_true.shape, "y_pred and y_true must have the same shape"
    weights = jnp.asarray(weights)
    if weights.ndim == 0:
        weights = jnp.broadcast_to(weights, (y_pred.shape[-1],))
    assert weights.ndim == 1 and y_pred.shape[-1] == weights.shape[0], \
        "weights must broadcast against the trailing dim"
    W = weights.shape[0]

    total_n = y_pred.size
    if total_n == 0:
        # torch.mean on an empty tensor is NaN.
        return jnp.float32(jnp.nan)

    esize = jnp.dtype(y_pred.dtype).itemsize
    sub_mult = max(8, (4 // max(esize, 1)) * 8)   # 8 (f32), 16 (bf16), 32 (8-bit)

    # Row length R must divide total_n exactly (zero-copy reshape, no pad) and
    # be a multiple of W (so the per-row weight pattern is position-invariant).
    L = (W * 128) // math.gcd(W, 128)             # lane-dense candidate
    lane_dense = (total_n % L == 0) and (sub_mult * L * esize <= target_block_bytes)
    R = L if lane_dense else W                    # W always divides total_n
    rows = total_n // R

    # Row tile: ~target_block_bytes per input block, multiple of sub_mult.
    max_tm = max(sub_mult, (target_block_bytes // (R * esize)) // sub_mult * sub_mult)
    if rows >= sub_mult:
        tm = min(max_tm, (rows // sub_mult) * sub_mult)
    else:
        tm = rows                                 # single block == full row extent

    steps_total = -(-rows // tm)                  # cdiv
    tail_rows = rows - (steps_total - 1) * tm     # valid rows in the last block

    # 2-way split of the reduction (megacore on v7x) only when it is an even,
    # pad-free split with enough work; otherwise a single chunk.
    num_par = 2 if (steps_total >= 4 and steps_total % 2 == 0 and tail_rows == tm) else 1
    steps = steps_total // num_par

    fold_rows = 8 if tm % 8 == 0 else 1

    # Zero-copy views: rows * R == total_n in both paths.
    pred2d = y_pred.reshape(rows, R)
    true2d = y_true.reshape(rows, R)
    w_row = jnp.tile(weights.astype(jnp.float32).reshape(-1), R // W).reshape(1, R)

    kernel = _make_wmse_kernel(tm=tm, fold_rows=fold_rows, tail_rows=tail_rows)

    flops = 4 * rows * R
    bytes_accessed = 2 * rows * R * esize + R * 4 + num_par * fold_rows * R * 4
    per_block = tm * R * esize
    vmem_usage = 2 * 2 * per_block + 2 * (R * 4) + 2 * (fold_rows * R * 4)
    vmem_limit = int(min(48 * 1024 * 1024, max(16 * 1024 * 1024, 2 * vmem_usage)))

    partials = pl.pallas_call(
        kernel,
        out_shape=jax.ShapeDtypeStruct((num_par * fold_rows, R), jnp.float32),
        grid_spec=pltpu.PrefetchScalarGridSpec(
            num_scalar_prefetch=0,
            grid=(num_par, steps),
            in_specs=[
                pl.BlockSpec((tm, R), lambda p, r: (p * steps + r, 0)),
                pl.BlockSpec((tm, R), lambda p, r: (p * steps + r, 0)),
                pl.BlockSpec((1, R), lambda p, r: (0, 0)),   # resident weights
            ],
            out_specs=pl.BlockSpec((fold_rows, R), lambda p, r: (p, 0)),
        ),
        compiler_params=pltpu.CompilerParams(
            dimension_semantics=("parallel", "arbitrary"),
            vmem_limit_bytes=vmem_limit,
        ),
        cost_estimate=pl.CostEstimate(
            flops=flops, transcendentals=0, bytes_accessed=bytes_accessed),
    )(pred2d, true2d, w_row)

    # Tiny final cross-lane reduce + mean in plain XLA.
    return jnp.sum(partials) / jnp.float32(total_n)


if __name__ == "__main__":
    key = jax.random.PRNGKey(0)
    k1, k2, k3 = jax.random.split(key, 3)

    B, C, H, W = 2, 4, 16, 16
    y_pred = jax.random.normal(k1, (B, C, H, W), dtype=jnp.float32)
    y_true = jax.random.normal(k2, (B, C, H, W), dtype=jnp.float32)
    weights = jax.random.uniform(k3, (W,), dtype=jnp.float32) + 0.5  # fixed "weights" param

    # Main check (matches the module's forward on small shapes).
    loss = jax.block_until_ready(weighted_mse_loss(y_pred, y_true, weights))
    ref = jnp.mean(jnp.square(y_pred - y_true) * weights)
    assert jnp.allclose(loss, ref, rtol=1e-5, atol=1e-6), (loss, ref)

    # Multi-step reduction path (small blocks force >1 grid step).
    y_pred2 = jax.random.normal(k1, (32, 4, 16, 16), dtype=jnp.float32)
    y_true2 = jax.random.normal(k2, (32, 4, 16, 16), dtype=jnp.float32)
    loss2 = jax.block_until_ready(
        weighted_mse_loss(y_pred2, y_true2, weights, target_block_bytes=64 * 1024))
    ref2 = jnp.mean(jnp.square(y_pred2 - y_true2) * weights)
    assert jnp.allclose(loss2, ref2, rtol=1e-5, atol=1e-6), (loss2, ref2)

    # 2-chunk "parallel" split path (even, pad-free reduction split).
    y_pred3 = jax.random.normal(k1, (64, 4, 16, 16), dtype=jnp.float32)
    y_true3 = jax.random.normal(k2, (64, 4, 16, 16), dtype=jnp.float32)
    loss3 = jax.block_until_ready(
        weighted_mse_loss(y_pred3, y_true3, weights, target_block_bytes=64 * 1024))
    ref3 = jnp.mean(jnp.square(y_pred3 - y_true3) * weights)
    assert jnp.allclose(loss3, ref3, rtol=1e-5, atol=1e-6), (loss3, ref3)

    # Native bf16 streaming (inputs stay bf16 in HBM, upcast in-register).
    y_pred_bf = y_pred.astype(jnp.bfloat16)
    y_true_bf = y_true.astype(jnp.bfloat16)
    loss_bf = jax.block_until_ready(weighted_mse_loss(y_pred_bf, y_true_bf, weights))
    ref_bf = jnp.mean(jnp.square(y_pred_bf.astype(jnp.float32) -
                                 y_true_bf.astype(jnp.float32)) * weights)
    assert jnp.allclose(loss_bf, ref_bf, rtol=1e-4, atol=1e-5), (loss_bf, ref_bf)

    print("KERNEL_OK")
</pallas_src>

<mosaic_0001>
module attributes {stable_mosaic.version = 11 : i64} {
  func.func @kernel(%arg0: i32, %arg1: i32, %arg2: memref<16x128xf32, #tpu.memory_space<vmem>>, %arg3: memref<16x128xf32, #tpu.memory_space<vmem>>, %arg4: memref<1x128xf32, #tpu.memory_space<vmem>>, %arg5: memref<8x128xf32, #tpu.memory_space<vmem>>) attributes {dimension_semantics = [#tpu.dimension_semantics<parallel>, #tpu.dimension_semantics<arbitrary>], iteration_bounds = array<i64: 1, 1>, scalar_prefetch = 0 : i64, scratch_operands = 0 : i64, tpu.core_type = #tpu.core_type<tc>, window_params = [{transform_indices = @transform_0, window_bounds = array<i64: 16, 128>}, {transform_indices = @transform_1, window_bounds = array<i64: 16, 128>}, {pipeline_mode = #tpu.pipeline_mode<synchronous>, transform_indices = @transform_2, window_bounds = array<i64: 1, 128>}, {transform_indices = @transform_3, window_bounds = array<i64: 8, 128>}]} {
    %c0_i32 = arith.constant 0 : i32
    %0 = arith.cmpi eq, %arg1, %c0_i32 : i32
    %1 = arith.extui %0 : i1 to i32
    %c0_i32_0 = arith.constant 0 : i32
    %2 = arith.cmpi ne, %1, %c0_i32_0 : i32
    scf.if %2 {
      %cst_10 = arith.constant 0.000000e+00 : f32
      %15 = vector.broadcast %cst_10 : f32 to vector<8x128xf32>
      %c0_11 = arith.constant 0 : index
      %c0_12 = arith.constant 0 : index
      %16 = vector.load %arg5[%c0_11, %c0_12] : memref<8x128xf32, #tpu.memory_space<vmem>>, vector<8x128xf32>
      tpu.vector_store %arg5[%c0_11, %c0_12], %15 {strides = array<i32>} : memref<8x128xf32, #tpu.memory_space<vmem>>, vector<8x128xf32>,
    } else {
    }
    %c0 = arith.constant 0 : index
    %c0_1 = arith.constant 0 : index
    %3 = vector.load %arg2[%c0, %c0_1] : memref<16x128xf32, #tpu.memory_space<vmem>>, vector<16x128xf32>
    %c0_2 = arith.constant 0 : index
    %c0_3 = arith.constant 0 : index
    %4 = vector.load %arg3[%c0_2, %c0_3] : memref<16x128xf32, #tpu.memory_space<vmem>>, vector<16x128xf32>
    %5 = arith.subf %3, %4 : vector<16x128xf32>
    %6 = arith.mulf %5, %5 : vector<16x128xf32>
    %c0_4 = arith.constant 0 : index
    %c0_5 = arith.constant 0 : index
    %7 = vector.load %arg4[%c0_4, %c0_5] : memref<1x128xf32, #tpu.memory_space<vmem>>, vector<1x128xf32>
    %8 = vector.broadcast %7 : vector<1x128xf32> to vector<16x128xf32>
    %9 = arith.mulf %6, %8 : vector<16x128xf32>
    %c0_6 = arith.constant 0 : index
    %c0_7 = arith.constant 0 : index
    %10 = vector.load %arg5[%c0_6, %c0_7] : memref<8x128xf32, #tpu.memory_space<vmem>>, vector<8x128xf32>
    %11 = vector.shape_cast %9 : vector<16x128xf32> to vector<2x8x128xf32>
    %cst = arith.constant dense<0.000000e+00> : vector<8x128xf32>
    %12 = vector.multi_reduction <add>, %11, %cst [0] : vector<2x8x128xf32> to vector<8x128xf32>
    %13 = arith.addf %10, %12 : vector<8x128xf32>
    %c0_8 = arith.constant 0 : index
    %c0_9 = arith.constant 0 : index
    %14 = vector.load %arg5[%c0_8, %c0_9] : memref<8x128xf32, #tpu.memory_space<vmem>>, vector<8x128xf32>
    tpu.vector_store %arg5[%c0_8, %c0_9], %13 {strides = array<i32>} : memref<8x128xf32, #tpu.memory_space<vmem>>, vector<8x128xf32>,
    return
  }
  func.func @transform_0(%arg0: i32, %arg1: i32) -> (i32, i32) {
    %c1_i32 = arith.constant 1 : i32
    %0 = arith.muli %arg0, %c1_i32 : i32
    %1 = arith.addi %0, %arg1 : i32
    %c0_i32 = arith.constant 0 : i32
    %c0_i32_0 = arith.constant 0 : i32
    return %1, %c0_i32 : i32, i32
  }
  func.func @transform_1(%arg0: i32, %arg1: i32) -> (i32, i32) {
    %c1_i32 = arith.constant 1 : i32
    %0 = arith.muli %arg0, %c1_i32 : i32
    %1 = arith.addi %0, %arg1 : i32
    %c0_i32 = arith.constant 0 : i32
    %c0_i32_0 = arith.constant 0 : i32
    return %1, %c0_i32 : i32, i32
  }
  func.func @transform_2(%arg0: i32, %arg1: i32) -> (i32, i32) {
    %c0_i32 = arith.constant 0 : i32
    %c0_i32_0 = arith.constant 0 : i32
    %c0_i32_1 = arith.constant 0 : i32
    return %c0_i32, %c0_i32_0 : i32, i32
  }
  func.func @transform_3(%arg0: i32, %arg1: i32) -> (i32, i32) {
    %c0_i32 = arith.constant 0 : i32
    %c0_i32_0 = arith.constant 0 : i32
    return %arg0, %c0_i32 : i32, i32
  }
}

</mosaic_0001>

<llo_original>
// kernel: tpu_custom_call.1
$region0: #{tpu_custom_call.1}
  #allocation0 [shape = 'u32[]', space=smem, size = 0x4, offset = 0x4, fixed_abs, tag = 'smem constant byte address 0x4 - core index']
  #allocation1 [shape = 'u32[72,128]{1,0:T(1,128)}', space=vmem, size = 0x9000, scoped, tag = 'internal scratch']
  %s0 = inlined_call_operand.hbm [shape: f32[16,128], index: 0, kind: input, shape index: {}]
  %s1 = inlined_call_operand.hbm [shape: f32[16,128], index: 1, kind: input, shape index: {}]
  %s2 = inlined_call_operand.vmem [shape: f32[1,128], index: 2, kind: input, shape index: {}]
  %s3 = inlined_call_operand.hbm [shape: f32[8,128], index: 3, kind: output, shape index: {}]
  %s4 = sld [smem:[#allocation0]]
  $region34: #{tpu_custom_call.1} parent=0
    _
  %s6 = ssub.s32 1, %s4
  %s7 = scalar_select 0, %s6, %s4
  $region1: #{tpu_custom_call.1} parent=0
    #allocation2 [shape = 'u8[8192]{0}', space=vmem, size = 0x2000, scoped, tag = 'input window, operand 0, single buffered']
    #allocation3 [shape = 's32[1]{0}', space=sflag, size = 0x4, scoped, tag = 'scoped memory for tpu_custom_call.1']
    #allocation4 [shape = 's32[1]{0}', space=sflag, size = 0x4, scoped, tag = 'scoped memory for tpu_custom_call.1']
    #allocation5 [shape = 'u8[8192]{0}', space=vmem, size = 0x2000, scoped, tag = 'input window, operand 1, single buffered']
    #allocation6 [shape = 's32[1]{0}', space=sflag, size = 0x4, scoped, tag = 'scoped memory for tpu_custom_call.1']
    #allocation7 [shape = 'u8[4096]{0}', space=vmem, size = 0x1000, scoped, tag = 'output window, operand 0, single buffered']
    %8 = vsyncpa [#allocation3], 0
    %9 = vsyncpa [#allocation6], 0
    %10 = vsyncpa [#allocation4], 0
    // Predicated region
    $region2: #{tpu_custom_call.1} parent=1 // pred_check
      _
    $region3: #{tpu_custom_call.1} parent=1 // pred_check_branch
      %12 = sbr.rel (0) target = $region5
    $region4: #{tpu_custom_call.1} parent=1 // pred_region
      %s13 = sadd.s32 0, 0
      %s14 = smul.u32 2, %s13
      %16 = vsyncadd [#allocation3], 0
      %s17 = smul.addr %s14, 8
      %s18 = scalar_lea.hbm %s0, %s17
      %s19 = sshll.u32 %s18, 4
      %s20 = int_to_ptr.hbm [resolvable:$true] %s19
      %s21 = sshll.u32 [#allocation2], 4
      %s22 = int_to_ptr.vmem [resolvable:$true] %s21
      %27 = dma.hbm_to_vmem [thread:$0]  %s20, 256, %s22, [#allocation3], 128, 128, 8
    $region5: #{tpu_custom_call.1} parent=1 // pred_fallthru
      _
    // Predicated region
    $region6: #{tpu_custom_call.1} parent=1 // pred_check
      _
    $region7: #{tpu_custom_call.1} parent=1 // pred_check_branch
      %29 = sbr.rel (0) target = $region9
    $region8: #{tpu_custom_call.1} parent=1 // pred_region
      %s30 = sadd.s32 0, 0
      %s31 = smul.u32 2, %s30
      %33 = vsyncadd [#allocation6], 0
      %s34 = smul.addr %s31, 8
      %s35 = scalar_lea.hbm %s1, %s34
      %s36 = sshll.u32 %s35, 4
      %s37 = int_to_ptr.hbm [resolvable:$true] %s36
      %s38 = sshll.u32 [#allocation5], 4
      %s39 = int_to_ptr.vmem [resolvable:$true] %s38
      %44 = dma.hbm_to_vmem [thread:$0]  %s37, 256, %s39, [#allocation6], 128, 128, 8
    $region9: #{tpu_custom_call.1} parent=1 // pred_fallthru
      _
    // Predicated region
    $region10: #{tpu_custom_call.1} parent=1 // pred_check
      _
    $region11: #{tpu_custom_call.1} parent=1 // pred_check_branch
      %46 = sbr.rel (0) target = $region13
    $region12: #{tpu_custom_call.1} parent=1 // pred_region
      _
    $region13: #{tpu_custom_call.1} parent=1 // pred_fallthru
      _
    // Predicated region
    $region14: #{tpu_custom_call.1} parent=1 // pred_check
      _
    $region15: #{tpu_custom_call.1} parent=1 // pred_check_branch
      %48 = sbr.rel (0) target = $region17
    $region16: #{tpu_custom_call.1} parent=1 // pred_region
      %50 = dma.done [#allocation3], 256
    $region17: #{tpu_custom_call.1} parent=1 // pred_fallthru
      _
    // Predicated region
    $region18: #{tpu_custom_call.1} parent=1 // pred_check
      _
    $region19: #{tpu_custom_call.1} parent=1 // pred_check_branch
      %52 = sbr.rel (0) target = $region21
    $region20: #{tpu_custom_call.1} parent=1 // pred_region
      %54 = dma.done [#allocation6], 256
    $region21: #{tpu_custom_call.1} parent=1 // pred_fallthru
      _
    %s55 = sadd.s32 0, 0
    %s56 = smul.u32 2, %s55
    %s57 = sadd.s32 0, 0
    %s58 = smul.u32 2, %s57
    %p59 = scmp.eq.s32.totalorder 0, 0
    // Predicated region
    $region22: #{tpu_custom_call.1} parent=1 // pred_check
      %p60 = pneg %p59
    $region23: #{tpu_custom_call.1} parent=1 // pred_check_branch
      %62 = sbr.rel (%p60) target = $region25
    $region24: #{tpu_custom_call.1} parent=1 // pred_region
      %63 = vst [vmem:[#allocation7] sm:$0xff] 0.0
    $region25: #{tpu_custom_call.1} parent=1 // pred_fallthru
      _
    %v64 = vld [vmem:[#allocation2] sm:$0xff]
    %v65 = vld [vmem:[#allocation2 + $0x8] sm:$0xff]
    %v66 = vld [vmem:[#allocation5] sm:$0xff]
    %v67 = vld [vmem:[#allocation5 + $0x8] sm:$0xff]
    %v68 = vsub.f32 %v64, %v66
    %v69 = vsub.f32 %v65, %v67
    %v70 = vmul.f32 %v68, %v68
    %v71 = vmul.f32 %v69, %v69
    %v72 = vld [vmem:[%s2] sm:$0x1]
    %v74 = vperm.slane %v72, 0
    %v76 = vmul.f32 %v70, %v74
    %v77 = vmul.f32 %v71, %v74
    %v78 = vld [vmem:[#allocation7] sm:$0xff]
    %v79 = vadd.f32 %v76, %v77
    %v80 = vadd.f32 %v78, %v79
    %81 = vst [vmem:[#allocation7] sm:$0xff] %v80
    // Predicated region
    $region26: #{tpu_custom_call.1} parent=1 // pred_check
      _
    $region27: #{tpu_custom_call.1} parent=1 // pred_check_branch
      %83 = sbr.rel (0) target = $region29
    $region28: #{tpu_custom_call.1} parent=1 // pred_region
      %85 = vsyncadd [#allocation4], 0
      %s87 = sshll.u32 [#allocation7], 4
      %s88 = int_to_ptr.vmem [resolvable:$true] %s87
      %s89 = sshll.u32 %s3, 4
      %s90 = int_to_ptr.hbm [resolvable:$true] %s89
      %92 = dma.vmem_to_hbm [thread:$0]  %s88, 128, %s90, [#allocation4]
    $region29: #{tpu_custom_call.1} parent=1 // pred_fallthru
      _
    // Predicated region
    $region30: #{tpu_custom_call.1} parent=1 // pred_check
      _
    $region31: #{tpu_custom_call.1} parent=1 // pred_check_branch
      %94 = sbr.rel (0) target = $region33
    $region32: #{tpu_custom_call.1} parent=1 // pred_region
      %96 = dma.done [#allocation4], 128
    $region33: #{tpu_custom_call.1} parent=1 // pred_fallthru
      _
    %97 = vsyncpa [#allocation3], 1
    %98 = vsyncpa [#allocation6], 1
    %99 = vsyncpa [#allocation4], 1

</llo_original>
